<compile_context>
chip_gen: v7x
topology: tpu7x:2x2x1
jax: 0.10.0
libtpu: 0.0.40
codegen_flags: <defaults>
</compile_context>

<pallas_src>
import jax
import jax.numpy as jnp
import numpy as np
from jax.experimental import pallas as pl
from jax.experimental.pallas import tpu as pltpu

NUM_CLASSES = 2
BOX_IN_FEATURES = 1024    # model.roi_heads.box_predictor.cls_score.in_features
MASK_IN_CHANNELS = 256    # model.roi_heads.mask_predictor.conv5_mask.in_channels
MASK_HIDDEN = 256         # hidden_layer = 256 in __init__
LANES = 128               # lane-dense output width


def _pad_rows(a, multiple):
    """Zero-pad the leading dim of `a` up to a multiple of `multiple`."""
    r = a.shape[0]
    rp = pl.cdiv(r, multiple) * multiple
    if rp != r:
        a = jnp.pad(a, [(0, rp - r)] + [(0, 0)] * (a.ndim - 1))
    return a


# --------------------------------------------------------------------------
# FastRCNNPredictor: one fused matmul  (tm, F) @ (F, 128) -> (tm, 128)
# columns [0:nc] = class scores, [nc:nc+4*nc] = bbox deltas, rest zero pad.
# --------------------------------------------------------------------------
def _box_predictor_kernel(x_ref, w_ref, b_ref, out_ref):
    out_ref[...] = (
        jnp.dot(x_ref[...], w_ref[...], preferred_element_type=jnp.float32)
        + b_ref[...])


def fast_rcnn_predictor(x, w_cls, b_cls, w_box, b_box, *, tm=128):
    """x: (R, F) float32.  Returns (scores (R, nc), bbox_deltas (R, 4*nc))."""
    R, F = x.shape
    nc = w_cls.shape[0]
    n_use = nc + 4 * nc                                    # 10
    assert n_use <= LANES

    # fused + zero-padded weight / bias (lane-dense N = 128)
    w = jnp.concatenate([w_cls.T, w_box.T], axis=1)        # (F, 10)
    w = jnp.pad(w, ((0, 0), (0, LANES - n_use))).astype(jnp.bfloat16)
    b = jnp.pad(jnp.concatenate([b_cls, b_box]).astype(jnp.float32),
                (0, LANES - n_use)).reshape(1, LANES)

    x_p = _pad_rows(x, tm).astype(jnp.bfloat16)
    Rp = x_p.shape[0]

    out = pl.pallas_call(
        _box_predictor_kernel,
        out_shape=jax.ShapeDtypeStruct((Rp, LANES), jnp.float32),
        grid=(Rp // tm,),
        in_specs=[pl.BlockSpec((tm, F), lambda i: (i, 0)),
                  pl.BlockSpec((F, LANES), lambda i: (0, 0)),
                  pl.BlockSpec((1, LANES), lambda i: (0, 0))],
        out_specs=pl.BlockSpec((tm, LANES), lambda i: (i, 0)),
        compiler_params=pltpu.CompilerParams(
            dimension_semantics=("parallel",)),
    )(x_p, w, b)

    return out[:R, :nc], out[:R, nc:n_use]


# --------------------------------------------------------------------------
# MaskRCNNPredictor: ConvTranspose2d(k=2,s=2) -> ReLU -> Conv2d(k=1)
# With kernel==stride==2 each output pixel receives exactly one input pixel,
# so the transposed conv is a single channel matmul against the 4 quadrant
# weights concatenated along N, and the 1x1 conv is a block-diagonal matmul
# (zero-padded to 128 output lanes for unmasked stores).
# --------------------------------------------------------------------------
def _mask_predictor_kernel(x_ref, wt_ref, bt_ref, w2_ref, b2_ref, out_ref):
    y = jnp.dot(x_ref[...], wt_ref[...], preferred_element_type=jnp.float32)
    y = jnp.maximum(y + bt_ref[...], 0.0)                   # bias + ReLU, one pass
    out_ref[...] = (
        jnp.dot(y.astype(w2_ref.dtype), w2_ref[...],
                preferred_element_type=jnp.float32)
        + b2_ref[...])


def mask_rcnn_predictor(x_nchw, wt, bt, w1, b1, *, tm=256):
    """x_nchw: (R, Cin, H, W).  Returns mask logits (R, num_classes, 2H, 2W)."""
    R, Cin, H, W = x_nchw.shape
    Chid = wt.shape[1]
    nc = w1.shape[0]
    n_use = 4 * nc                                          # 8
    assert n_use <= LANES
    P = R * H * W

    # channels-last pixel matrix, row-padded to the tile size
    x_flat = jnp.transpose(x_nchw, (0, 2, 3, 1)).reshape(P, Cin)
    x_p = _pad_rows(x_flat, tm).astype(jnp.bfloat16)
    Pp = x_p.shape[0]

    # ConvTranspose2d weight (Cin, Chid, 2, 2) -> (Cin, 4*Chid), q = di*2+dj
    wt_cat = jnp.transpose(wt, (0, 2, 3, 1)).reshape(Cin, 4 * Chid)
    wt_cat = wt_cat.astype(jnp.bfloat16)
    bt_cat = jnp.tile(bt.astype(jnp.float32), 4).reshape(1, 4 * Chid)

    # block-diagonal 1x1-conv weight (4*Chid, LANES); quadrant q's hidden block
    # maps to output columns [q*nc:(q+1)*nc], remaining columns are zero.
    w1_t = w1.reshape(nc, Chid).T                           # (Chid, nc)
    w2 = jnp.zeros((4 * Chid, LANES), jnp.float32)
    for q in range(4):
        w2 = w2.at[q * Chid:(q + 1) * Chid, q * nc:(q + 1) * nc].set(w1_t)
    w2 = w2.astype(jnp.bfloat16)
    b2 = jnp.pad(jnp.tile(b1.astype(jnp.float32), 4),
                 (0, LANES - n_use)).reshape(1, LANES)

    out = pl.pallas_call(
        _mask_predictor_kernel,
        out_shape=jax.ShapeDtypeStruct((Pp, LANES), jnp.float32),
        grid=(Pp // tm,),
        in_specs=[pl.BlockSpec((tm, Cin), lambda i: (i, 0)),
                  pl.BlockSpec((Cin, 4 * Chid), lambda i: (0, 0)),
                  pl.BlockSpec((1, 4 * Chid), lambda i: (0, 0)),
                  pl.BlockSpec((4 * Chid, LANES), lambda i: (0, 0)),
                  pl.BlockSpec((1, LANES), lambda i: (0, 0))],
        out_specs=pl.BlockSpec((tm, LANES), lambda i: (i, 0)),
        compiler_params=pltpu.CompilerParams(
            dimension_semantics=("parallel",)),
    )(x_p, wt_cat, bt_cat, w2, b2)

    # (Pp, 128) -> useful (P, 4*nc) -> (R, H, W, di, dj, nc) -> NCHW (R,nc,2H,2W)
    out = out[:P, :n_use].reshape(R, H, W, 2, 2, nc)
    out = jnp.transpose(out, (0, 5, 1, 3, 2, 4)).reshape(R, nc, 2 * H, 2 * W)
    return out


# --------------------------------------------------------------------------
# pure-JAX references (same bf16-operand / f32-accumulation recipe as the
# kernels, so the comparison isolates kernel bugs rather than dtype choice)
# --------------------------------------------------------------------------
def _r16(a):
    return a.astype(jnp.bfloat16).astype(jnp.float32)


def _box_ref(x, w_cls, b_cls, w_box, b_box):
    xb = _r16(x)
    return xb @ _r16(w_cls).T + b_cls, xb @ _r16(w_box).T + b_box


def _mask_ref(x_nchw, wt, bt, w1, b1):
    R, Cin, H, W = x_nchw.shape
    Chid = wt.shape[1]
    nc = w1.shape[0]
    # ConvTranspose2d k=2 s=2:  out[n,co,2i+di,2j+dj] = sum_ci x[n,ci,i,j]*Wt[ci,co,di,dj]+bt
    y = jnp.einsum('ncij,codb->noidjb', _r16(x_nchw), _r16(wt))
    y = y.reshape(R, Chid, 2 * H, 2 * W) + bt[None, :, None, None]
    y = _r16(jnp.maximum(y, 0.0))                       # kernel casts ReLU out to bf16
    out = jnp.einsum('nchw,kc->nkhw', y, _r16(w1.reshape(nc, Chid)))
    return out + b1[None, :, None, None]


if __name__ == "__main__":
    key = jax.random.PRNGKey(0)
    ks = jax.random.split(key, 8)

    # ---- synthetic ROI-head inputs (small but architecture-consistent) ----
    R_box = 300                         # box proposals (not a multiple of 128)
    R_mask = 10                         # mask proposals
    Hm = Wm = 14                        # mask-head feature resolution

    box_feats = jax.random.normal(ks[0], (R_box, BOX_IN_FEATURES), jnp.float32)
    mask_feats = jax.random.normal(
        ks[1], (R_mask, MASK_IN_CHANNELS, Hm, Wm), jnp.float32)

    # ---- deterministic parameter init (shapes from the module __init__) ----
    s = 0.02
    w_cls = s * jax.random.normal(ks[2], (NUM_CLASSES, BOX_IN_FEATURES), jnp.float32)
    b_cls = s * jax.random.normal(ks[3], (NUM_CLASSES,), jnp.float32)
    w_box = s * jax.random.normal(ks[4], (NUM_CLASSES * 4, BOX_IN_FEATURES), jnp.float32)
    b_box = jnp.zeros((NUM_CLASSES * 4,), jnp.float32)
    wt = s * jax.random.normal(ks[5], (MASK_IN_CHANNELS, MASK_HIDDEN, 2, 2), jnp.float32)
    bt = s * jax.random.normal(ks[6], (MASK_HIDDEN,), jnp.float32)
    w1 = s * jax.random.normal(ks[7], (NUM_CLASSES, MASK_HIDDEN, 1, 1), jnp.float32)
    b1 = jnp.zeros((NUM_CLASSES,), jnp.float32)

    # ---- run Pallas kernels ----
    scores, deltas = fast_rcnn_predictor(box_feats, w_cls, b_cls, w_box, b_box)
    mask_logits = mask_rcnn_predictor(mask_feats, wt, bt, w1, b1)
    jax.block_until_ready((scores, deltas, mask_logits))

    # ---- verify against pure-JAX references ----
    scores_r, deltas_r = _box_ref(box_feats, w_cls, b_cls, w_box, b_box)
    mask_r = _mask_ref(mask_feats, wt, bt, w1, b1)
    np.testing.assert_allclose(np.asarray(scores), np.asarray(scores_r),
                               rtol=2e-3, atol=2e-3)
    np.testing.assert_allclose(np.asarray(deltas), np.asarray(deltas_r),
                               rtol=2e-3, atol=2e-3)
    np.testing.assert_allclose(np.asarray(mask_logits), np.asarray(mask_r),
                               rtol=5e-3, atol=5e-3)
    assert scores.shape == (R_box, NUM_CLASSES)
    assert deltas.shape == (R_box, NUM_CLASSES * 4)
    assert mask_logits.shape == (R_mask, NUM_CLASSES, 2 * Hm, 2 * Wm)

    print("KERNEL_OK")
</pallas_src>

<mosaic_0001>
module attributes {stable_mosaic.version = 11 : i64} {
  func.func @_box_predictor_kernel(%arg0: i32, %arg1: memref<128x1024xbf16, #tpu.memory_space<vmem>>, %arg2: memref<1024x128xbf16, #tpu.memory_space<vmem>>, %arg3: memref<1x128xf32, #tpu.memory_space<vmem>>, %arg4: memref<128x128xf32, #tpu.memory_space<vmem>>) attributes {dimension_semantics = [#tpu.dimension_semantics<parallel>], iteration_bounds = array<i64: 3>, scalar_prefetch = 0 : i64, scratch_operands = 0 : i64, tpu.core_type = #tpu.core_type<tc>, window_params = [{transform_indices = @transform_0, window_bounds = array<i64: 128, 1024>}, {pipeline_mode = #tpu.pipeline_mode<synchronous>, transform_indices = @transform_1, window_bounds = array<i64: 1024, 128>}, {pipeline_mode = #tpu.pipeline_mode<synchronous>, transform_indices = @transform_2, window_bounds = array<i64: 1, 128>}, {transform_indices = @transform_3, window_bounds = array<i64: 128, 128>}]} {
    %c0 = arith.constant 0 : index
    %c0_0 = arith.constant 0 : index
    %0 = vector.load %arg1[%c0, %c0_0] : memref<128x1024xbf16, #tpu.memory_space<vmem>>, vector<128x1024xbf16>
    %c0_1 = arith.constant 0 : index
    %c0_2 = arith.constant 0 : index
    %1 = vector.load %arg2[%c0_1, %c0_2] : memref<1024x128xbf16, #tpu.memory_space<vmem>>, vector<1024x128xbf16>
    %cst = arith.constant dense<0.000000e+00> : vector<128x128xf32>
    %2 = tpu.matmul %0, %1, %cst {dimension_numbers = #tpu.dot_dimension_numbers<[1], [0], [0], [1], [0, 0, 1, 1], [], []>} : vector<128x1024xbf16>, vector<1024x128xbf16>, vector<128x128xf32> -> vector<128x128xf32>
    %c0_3 = arith.constant 0 : index
    %c0_4 = arith.constant 0 : index
    %3 = vector.load %arg3[%c0_3, %c0_4] : memref<1x128xf32, #tpu.memory_space<vmem>>, vector<1x128xf32>
    %4 = vector.broadcast %3 : vector<1x128xf32> to vector<128x128xf32>
    %5 = arith.addf %2, %4 : vector<128x128xf32>
    %c0_5 = arith.constant 0 : index
    %c0_6 = arith.constant 0 : index
    %6 = vector.load %arg4[%c0_5, %c0_6] : memref<128x128xf32, #tpu.memory_space<vmem>>, vector<128x128xf32>
    tpu.vector_store %arg4[%c0_5, %c0_6], %5 {strides = array<i32>} : memref<128x128xf32, #tpu.memory_space<vmem>>, vector<128x128xf32>,
    return
  }
  func.func @transform_0(%arg0: i32) -> (i32, i32) {
    %c0_i32 = arith.constant 0 : i32
    %c0_i32_0 = arith.constant 0 : i32
    return %arg0, %c0_i32 : i32, i32
  }
  func.func @transform_1(%arg0: i32) -> (i32, i32) {
    %c0_i32 = arith.constant 0 : i32
    %c0_i32_0 = arith.constant 0 : i32
    %c0_i32_1 = arith.constant 0 : i32
    return %c0_i32, %c0_i32_0 : i32, i32
  }
  func.func @transform_2(%arg0: i32) -> (i32, i32) {
    %c0_i32 = arith.constant 0 : i32
    %c0_i32_0 = arith.constant 0 : i32
    %c0_i32_1 = arith.constant 0 : i32
    return %c0_i32, %c0_i32_0 : i32, i32
  }
  func.func @transform_3(%arg0: i32) -> (i32, i32) {
    %c0_i32 = arith.constant 0 : i32
    %c0_i32_0 = arith.constant 0 : i32
    return %arg0, %c0_i32 : i32, i32
  }
}

</mosaic_0001>

<llo_original>
// kernel: tpu_custom_call.1
$region0: #{tpu_custom_call.1}
  #allocation0 [shape = 'u32[]', space=smem, size = 0x4, offset = 0x4, fixed_abs, tag = 'smem constant byte address 0x4 - core index']
  #allocation1 [shape = 'u32[144,128]{1,0:T(1,128)}', space=vmem, size = 0x12000, scoped, tag = 'internal scratch']
  %s0 = inlined_call_operand.hbm [shape: bf16[384,1024], index: 0, kind: input, shape index: {}]
  %s1 = inlined_call_operand.hbm [shape: bf16[1024,128], index: 1, kind: input, shape index: {}]
  %s2 = inlined_call_operand.vmem [shape: f32[1,128], index: 2, kind: input, shape index: {}]
  %s3 = inlined_call_operand.hbm [shape: f32[384,128], index: 3, kind: output, shape index: {}]
  %s4 = sld [smem:[#allocation0]]
  $region53: #{tpu_custom_call.1} parent=0
    _
  %s6 = ssub.s32 1, %s4
  %s7 = scalar_select 0, %s6, %s4
  $region1: #{tpu_custom_call.1} parent=0
    #allocation2 [shape = 'u8[524288]{0}', space=vmem, size = 0x80000, scoped, tag = 'input window, operand 0']
    #allocation3 [shape = 's32[2]{0}', space=sflag, size = 0x8, scoped, tag = 'scoped memory for tpu_custom_call.1']
    #allocation4 [shape = 's32[2]{0}', space=sflag, size = 0x8, scoped, tag = 'scoped memory for tpu_custom_call.1']
    #allocation5 [shape = 'u8[262144]{0}', space=vmem, size = 0x40000, scoped, tag = 'input window, operand 1, single buffered']
    #allocation6 [shape = 's32[1]{0}', space=sflag, size = 0x4, scoped, tag = 'scoped memory for tpu_custom_call.1']
    #allocation7 [shape = 'u8[131072]{0}', space=vmem, size = 0x20000, scoped, tag = 'output window, operand 0']
    %8 = vsyncpa [#allocation3], 0
    %s9 = scalar_lea.sflag [#allocation3], 1
    %10 = vsyncpa %s9, 0
    %11 = vsyncpa [#allocation6], 0
    %12 = vsyncpa [#allocation4], 0
    %s13 = scalar_lea.sflag [#allocation4], 1
    %14 = vsyncpa %s13, 0
    loop: start=0, step=1, limit=5
    $region2: #{tpu_custom_call.1} parent=1 // loop_pre_header
      _
    $region3: #{tpu_custom_call.1} parent=1 // loop_header
      %s16 = sphi 0, %s20
      %p17 = scmp.ge.s32.totalorder %s16, 5
      %s26 = sphi 0, %s28
      %s29 = sphi 0, %s26
      %s30 = sphi 0, %s29
      %s46 = sphi 0, %s30
      %s50 = sphi 0, %s50
      %s52 = sphi 0, %s50
      %s53 = sphi 0, %s52
      %s67 = sphi 0, %s53
      %s71 = sphi 0, %s71
      %s73 = sphi 0, %s71
      %s74 = sphi 0, %s73
      %s88 = sphi 0, %s74
      %s94 = sphi 0, %s96
      %s97 = sphi 0, %s94
      %s98 = sphi 0, %s97
      %s114 = sphi 0, %s98
    $region4: #{tpu_custom_call.1} parent=1 // loop_header_branch
      %19 = sbr.rel (%p17) target = $region8
    $region5: #{tpu_custom_call.1} parent=1 // loop_body
      %s21 = ssub.s32 %s16, 1
      %s22 = ssub.s32 %s16, 2
      %s23 = sadd.s32 %s16, 1
      %s24 = ssub.s32 %s16, %s23
      %p25 = scmp.eq.s32.totalorder %s24, 0
      %s27 = sadd.s32 %s26, 1
      %s28 = scalar_select %p25, %s26, %s27
      %p31 = pneg %p25
      %p32 = scmp.eq.s32.totalorder %s16, 2
      %p33 = por %p31, %p32
      %p34 = scmp.ne.s32.totalorder %s26, %s29
      %p35 = scmp.eq.s32.totalorder %s16, 0
      %p36 = por %p34, %p35
      %p37 = scmp.ne.s32.totalorder %s26, %s29
      %p38 = scmp.eq.s32.totalorder %s21, 2
      %p39 = por %p37, %p38
      %p40 = scmp.ne.s32.totalorder %s29, %s30
      %p41 = scmp.eq.s32.totalorder %s21, 0
      %p42 = por %p40, %p41
      %p43 = scmp.ne.s32.totalorder %s29, %s30
      %p44 = scmp.eq.s32.totalorder %s22, 2
      %p45 = por %p43, %p44
      %p47 = scmp.ne.s32.totalorder %s30, %s46
      %p48 = scmp.eq.s32.totalorder %s22, 0
      %p49 = por %p47, %p48
      %s51 = sadd.s32 %s50, 1
      %p54 = scmp.eq.s32.totalorder %s16, 2
      %p55 = scmp.ne.s32.totalorder %s50, %s52
      %p56 = scmp.eq.s32.totalorder %s16, 0
      %p57 = por %p55, %p56
      %p58 = scmp.ne.s32.totalorder %s50, %s52
      %p59 = scmp.eq.s32.totalorder %s21, 2
      %p60 = por %p58, %p59
      %p61 = scmp.ne.s32.totalorder %s52, %s53
      %p62 = scmp.eq.s32.totalorder %s21, 0
      %p63 = por %p61, %p62
      %p64 = scmp.ne.s32.totalorder %s52, %s53
      %p65 = scmp.eq.s32.totalorder %s22, 2
      %p66 = por %p64, %p65
      %p68 = scmp.ne.s32.totalorder %s53, %s67
      %p69 = scmp.eq.s32.totalorder %s22, 0
      %p70 = por %p68, %p69
      %s72 = sadd.s32 %s71, 1
      %p75 = scmp.eq.s32.totalorder %s16, 2
      %p76 = scmp.ne.s32.totalorder %s71, %s73
      %p77 = scmp.eq.s32.totalorder %s16, 0
      %p78 = por %p76, %p77
      %p79 = scmp.ne.s32.totalorder %s71, %s73
      %p80 = scmp.eq.s32.totalorder %s21, 2
      %p81 = por %p79, %p80
      %p82 = scmp.ne.s32.totalorder %s73, %s74
      %p83 = scmp.eq.s32.totalorder %s21, 0
      %p84 = por %p82, %p83
      %p85 = scmp.ne.s32.totalorder %s73, %s74
      %p86 = scmp.eq.s32.totalorder %s22, 2
      %p87 = por %p85, %p86
      %p89 = scmp.ne.s32.totalorder %s74, %s88
      %p90 = scmp.eq.s32.totalorder %s22, 0
      %p91 = por %p89, %p90
      %s92 = ssub.s32 %s16, %s23
      %p93 = scmp.eq.s32.totalorder %s92, 0
      %s95 = sadd.s32 %s94, 1
      %s96 = scalar_select %p93, %s94, %s95
      %p99 = pneg %p93
      %p100 = scmp.eq.s32.totalorder %s16, 2
      %p101 = por %p99, %p100
      %p102 = scmp.ne.s32.totalorder %s94, %s97
      %p103 = scmp.eq.s32.totalorder %s16, 0
      %p104 = por %p102, %p103
      %p105 = scmp.ne.s32.totalorder %s94, %s97
      %p106 = scmp.eq.s32.totalorder %s21, 2
      %p107 = por %p105, %p106
      %p108 = scmp.ne.s32.totalorder %s97, %s98
      %p109 = scmp.eq.s32.totalorder %s21, 0
      %p110 = por %p108, %p109
      %p111 = scmp.ne.s32.totalorder %s97, %s98
      %p112 = scmp.eq.s32.totalorder %s22, 2
      %p113 = por %p111, %p112
      %p115 = scmp.ne.s32.totalorder %s98, %s114
      %p116 = scmp.eq.s32.totalorder %s22, 0
      %p117 = por %p115, %p116
      %p118 = scmp.le.s32.totalorder 1, %s16
      %p119 = scmp.lt.s32.totalorder %s16, 4
      %p120 = pnand %p118, %p119
      %p121 = pneg %p120
      // Predicated region
      $region9: #{tpu_custom_call.1} parent=5 // pred_check
        _
      $region10: #{tpu_custom_call.1} parent=5 // pred_check_branch
        %123 = sbr.rel (%p120) target = $region12
      $region11: #{tpu_custom_call.1} parent=5 // pred_region
        %s124 = ssub.s32 %s16, 1
        // Predicated region
        $region13: #{tpu_custom_call.1} parent=11 // pred_check
          %p125 = pneg %p63
        $region14: #{tpu_custom_call.1} parent=11 // pred_check_branch
          %127 = sbr.rel (%p125) target = $region16
        $region15: #{tpu_custom_call.1} parent=11 // pred_region
          %s129 = ssub.s32 8192, 8192
          %130 = vsyncadd [#allocation6], %s129
          %s131 = sshll.u32 [#allocation5], 4
          %s132 = int_to_ptr.vmem [resolvable:$true] %s131
          %137 = dma.hbm_to_vmem [thread:$0]  %s1, 8192, %s132, [#allocation6], 64, 64, 4
        $region16: #{tpu_custom_call.1} parent=11 // pred_fallthru
          _
        // Predicated region
        $region17: #{tpu_custom_call.1} parent=11 // pred_check
          %p138 = pneg %p84
        $region18: #{tpu_custom_call.1} parent=11 // pred_check_branch
          %140 = sbr.rel (%p138) target = $region20
        $region19: #{tpu_custom_call.1} parent=11 // pred_region
          _
        $region20: #{tpu_custom_call.1} parent=11 // pred_fallthru
          _
      $region12: #{tpu_custom_call.1} parent=5 // pred_fallthru
        _
      %p141 = scmp.lt.s32.totalorder %s16, 3
      // Predicated region
      $region21: #{tpu_custom_call.1} parent=5 // pred_check
        %p142 = pneg %p141
      $region22: #{tpu_custom_call.1} parent=5 // pred_check_branch
        %144 = sbr.rel (%p142) target = $region24
      $region23: #{tpu_custom_call.1} parent=5 // pred_region
        // Predicated region
        $region25: #{tpu_custom_call.1} parent=23 // pred_check
          %p145 = pneg %p36
        $region26: #{tpu_custom_call.1} parent=23 // pred_check_branch
          %147 = sbr.rel (%p145) target = $region28
        $region27: #{tpu_custom_call.1} parent=23 // pred_region
          %s148 = sand.u32 %s26, 1
          %s149 = scalar_lea.sflag [#allocation3], %s148
          %s150 = sand.u32 %s26, 1
          %s151 = smul.addr %s150, 512
          %s152 = scalar_lea.vmem [#allocation2], %s151
          %s153 = smul.u32 16, %s16
          %s155 = ssub.s32 8192, 8192
          %156 = vsyncadd %s149, %s155
          %s157 = smul.addr %s153, 8
          %s158 = smul.addr %s157, 64
          %s159 = scalar_lea.hbm %s0, %s158
          %s160 = sshll.u32 %s152, 4
          %s161 = int_to_ptr.vmem [resolvable:$true] %s160
          %166 = dma.hbm_to_vmem [thread:$0]  %s159, 8192, %s161, %s149, 512, 512, 32
        $region28: #{tpu_custom_call.1} parent=23 // pred_fallthru
          _
      $region24: #{tpu_custom_call.1} parent=5 // pred_fallthru
        _
      %p167 = scmp.le.s32.totalorder 1, %s16
      %p168 = scmp.lt.s32.totalorder %s16, 4
      %p169 = pnand %p167, %p168
      %p170 = pneg %p169
      // Predicated region
      $region29: #{tpu_custom_call.1} parent=5 // pred_check
        _
      $region30: #{tpu_custom_call.1} parent=5 // pred_check_branch
        %172 = sbr.rel (%p169) target = $region32
      $region31: #{tpu_custom_call.1} parent=5 // pred_region
        %s173 = ssub.s32 %s16, 1
        %s174 = sand.u32 %s29, 1
        %s175 = scalar_lea.sflag [#allocation3], %s174
        %s176 = sand.u32 %s29, 1
        %s177 = smul.addr %s176, 512
        %s178 = scalar_lea.vmem [#allocation2], %s177
        // Predicated region
        $region33: #{tpu_custom_call.1} parent=31 // pred_check
          %p179 = pneg %p42
        $region34: #{tpu_custom_call.1} parent=31 // pred_check_branch
          %181 = sbr.rel (%p179) target = $region36
        $region35: #{tpu_custom_call.1} parent=31 // pred_region
          %182 = dma.done %s175, 8192
        $region36: #{tpu_custom_call.1} parent=31 // pred_fallthru
          _
        // Predicated region
        $region37: #{tpu_custom_call.1} parent=31 // pred_check
          %p183 = pneg %p63
        $region38: #{tpu_custom_call.1} parent=31 // pred_check_branch
          %185 = sbr.rel (%p183) target = $region40
        $region39: #{tpu_custom_call.1} parent=31 // pred_region
          %186 = dma.done [#allocation6], 8192
        $region40: #{tpu_custom_call.1} parent=31 // pred_fallthru
          _
        %s187 = sand.u32 %s29, 1
        %s188 = scalar_lea.sflag [#allocation3], %s187
        %s189 = sand.u32 %s29, 1
        %s190 = smul.addr %s189, 512
        %s191 = scalar_lea.vmem [#allocation2], %s190
        %p192 = pneg %p42
        %p193 = pneg %p39
        %p194 = pneg %p63
        %p195 = pneg %p60
        %p196 = pneg %p84
        %p197 = pneg %p81
        %p198 = pneg %p110
        %p199 = pneg %p107
        %s200 = sand.u32 %s97, 1
        %s201 = scalar_lea.sflag [#allocation4], %s200
        %s202 = sand.u32 %s97, 1
        %s203 = smul.addr %s202, 128
        %s204 = scalar_lea.vmem [#allocation7], %s203
        %s205 = smul.u32 16, %s21
        %s206 = smul.u32 16, %s21
        %v208 = vld [vmem:[%s178] sm:$0xff]
        %v209 = vld [vmem:[%s178 + $0x8] sm:$0xff]
        %v210 = vld [vmem:[%s178 + $0x10] sm:$0xff]
        %v211 = vld [vmem:[%s178 + $0x18] sm:$0xff]
        %v212 = vld [vmem:[%s178 + $0x20] sm:$0xff]
        %v213 = vld [vmem:[%s178 + $0x28] sm:$0xff]
        %v214 = vld [vmem:[%s178 + $0x30] sm:$0xff]
        %v215 = vld [vmem:[%s178 + $0x38] sm:$0xff]
        %v216 = vld [vmem:[%s178 + $0x40] sm:$0xff]
        %v217 = vld [vmem:[%s178 + $0x48] sm:$0xff]
        %v218 = vld [vmem:[%s178 + $0x50] sm:$0xff]
        %v219 = vld [vmem:[%s178 + $0x58] sm:$0xff]
        %v220 = vld [vmem:[%s178 + $0x60] sm:$0xff]
        %v221 = vld [vmem:[%s178 + $0x68] sm:$0xff]
        %v222 = vld [vmem:[%s178 + $0x70] sm:$0xff]
        %v223 = vld [vmem:[%s178 + $0x78] sm:$0xff]
        %v224 = vld [vmem:[%s178 + $0x80] sm:$0xff]
        %v225 = vld [vmem:[%s178 + $0x88] sm:$0xff]
        %v226 = vld [vmem:[%s178 + $0x90] sm:$0xff]
        %v227 = vld [vmem:[%s178 + $0x98] sm:$0xff]
        %v228 = vld [vmem:[%s178 + $0xa0] sm:$0xff]
        %v229 = vld [vmem:[%s178 + $0xa8] sm:$0xff]
        %v230 = vld [vmem:[%s178 + $0xb0] sm:$0xff]
        %v231 = vld [vmem:[%s178 + $0xb8] sm:$0xff]
        %v232 = vld [vmem:[%s178 + $0xc0] sm:$0xff]
        %v233 = vld [vmem:[%s178 + $0xc8] sm:$0xff]
        %v234 = vld [vmem:[%s178 + $0xd0] sm:$0xff]
        %v235 = vld [vmem:[%s178 + $0xd8] sm:$0xff]
        %v236 = vld [vmem:[%s178 + $0xe0] sm:$0xff]
        %v237 = vld [vmem:[%s178 + $0xe8] sm:$0xff]
        %v238 = vld [vmem:[%s178 + $0xf0] sm:$0xff]
        %v239 = vld [vmem:[%s178 + $0xf8] sm:$0xff]
        %v240 = vld [vmem:[%s178 + $0x100] sm:$0xff]
        %v241 = vld [vmem:[%s178 + $0x108] sm:$0xff]
        %v242 = vld [vmem:[%s178 + $0x110] sm:$0xff]
        %v243 = vld [vmem:[%s178 + $0x118] sm:$0xff]
        %v244 = vld [vmem:[%s178 + $0x120] sm:$0xff]
        %v245 = vld [vmem:[%s178 + $0x128] sm:$0xff]
        %v246 = vld [vmem:[%s178 + $0x130] sm:$0xff]
        %v247 = vld [vmem:[%s178 + $0x138] sm:$0xff]
        %v248 = vld [vmem:[%s178 + $0x140] sm:$0xff]
        %v249 = vld [vmem:[%s178 + $0x148] sm:$0xff]
        %v250 = vld [vmem:[%s178 + $0x150] sm:$0xff]
        %v251 = vld [vmem:[%s178 + $0x158] sm:$0xff]
        %v252 = vld [vmem:[%s178 + $0x160] sm:$0xff]
        %v253 = vld [vmem:[%s178 + $0x168] sm:$0xff]
        %v254 = vld [vmem:[%s178 + $0x170] sm:$0xff]
        %v255 = vld [vmem:[%s178 + $0x178] sm:$0xff]
        %v256 = vld [vmem:[%s178 + $0x180] sm:$0xff]
        %v257 = vld [vmem:[%s178 + $0x188] sm:$0xff]
        %v258 = vld [vmem:[%s178 + $0x190] sm:$0xff]
        %v259 = vld [vmem:[%s178 + $0x198] sm:$0xff]
        %v260 = vld [vmem:[%s178 + $0x1a0] sm:$0xff]
        %v261 = vld [vmem:[%s178 + $0x1a8] sm:$0xff]
        %v262 = vld [vmem:[%s178 + $0x1b0] sm:$0xff]
        %v263 = vld [vmem:[%s178 + $0x1b8] sm:$0xff]
        %v264 = vld [vmem:[%s178 + $0x1c0] sm:$0xff]
        %v265 = vld [vmem:[%s178 + $0x1c8] sm:$0xff]
        %v266 = vld [vmem:[%s178 + $0x1d0] sm:$0xff]
        %v267 = vld [vmem:[%s178 + $0x1d8] sm:$0xff]
        %v268 = vld [vmem:[%s178 + $0x1e0] sm:$0xff]
        %v269 = vld [vmem:[%s178 + $0x1e8] sm:$0xff]
        %v270 = vld [vmem:[%s178 + $0x1f0] sm:$0xff]
        %v271 = vld [vmem:[%s178 + $0x1f8] sm:$0xff]
        %v272 = vld [vmem:[#allocation5] sm:$0xf]
        %v273 = vld [vmem:[#allocation5 + $0x4] sm:$0xf]
        %v274 = vld [vmem:[#allocation5 + $0x8] sm:$0xf]
        %v275 = vld [vmem:[#allocation5 + $0xc] sm:$0xf]
        %v276 = vld [vmem:[#allocation5 + $0x10] sm:$0xf]
        %v277 = vld [vmem:[#allocation5 + $0x14] sm:$0xf]
        %v278 = vld [vmem:[#allocation5 + $0x18] sm:$0xf]
        %v279 = vld [vmem:[#allocation5 + $0x1c] sm:$0xf]
        %v280 = vld [vmem:[#allocation5 + $0x20] sm:$0xf]
        %v281 = vld [vmem:[#allocation5 + $0x24] sm:$0xf]
        %v282 = vld [vmem:[#allocation5 + $0x28] sm:$0xf]
        %v283 = vld [vmem:[#allocation5 + $0x2c] sm:$0xf]
        %v284 = vld [vmem:[#allocation5 + $0x30] sm:$0xf]
        %v285 = vld [vmem:[#allocation5 + $0x34] sm:$0xf]
        %v286 = vld [vmem:[#allocation5 + $0x38] sm:$0xf]
        %v287 = vld [vmem:[#allocation5 + $0x3c] sm:$0xf]
        %v288 = vld [vmem:[#allocation5 + $0x40] sm:$0xf]
        %v289 = vld [vmem:[#allocation5 + $0x44] sm:$0xf]
        %v290 = vld [vmem:[#allocation5 + $0x48] sm:$0xf]
        %v291 = vld [vmem:[#allocation5 + $0x4c] sm:$0xf]
        %v292 = vld [vmem:[#allocation5 + $0x50] sm:$0xf]
        %v293 = vld [vmem:[#allocation5 + $0x54] sm:$0xf]
        %v294 = vld [vmem:[#allocation5 + $0x58] sm:$0xf]
        %v295 = vld [vmem:[#allocation5 + $0x5c] sm:$0xf]
        %v296 = vld [vmem:[#allocation5 + $0x60] sm:$0xf]
        %v297 = vld [vmem:[#allocation5 + $0x64] sm:$0xf]
        %v298 = vld [vmem:[#allocation5 + $0x68] sm:$0xf]
        %v299 = vld [vmem:[#allocation5 + $0x6c] sm:$0xf]
        %v300 = vld [vmem:[#allocation5 + $0x70] sm:$0xf]
        %v301 = vld [vmem:[#allocation5 + $0x74] sm:$0xf]
        %v302 = vld [vmem:[#allocation5 + $0x78] sm:$0xf]
        %v303 = vld [vmem:[#allocation5 + $0x7c] sm:$0xf]
        %v304 = vld [vmem:[#allocation5 + $0x80] sm:$0xf]
        %v305 = vld [vmem:[#allocation5 + $0x84] sm:$0xf]
        %v306 = vld [vmem:[#allocation5 + $0x88] sm:$0xf]
        %v307 = vld [vmem:[#allocation5 + $0x8c] sm:$0xf]
        %v308 = vld [vmem:[#allocation5 + $0x90] sm:$0xf]
        %v309 = vld [vmem:[#allocation5 + $0x94] sm:$0xf]
        %v310 = vld [vmem:[#allocation5 + $0x98] sm:$0xf]
        %v311 = vld [vmem:[#allocation5 + $0x9c] sm:$0xf]
        %v312 = vld [vmem:[#allocation5 + $0xa0] sm:$0xf]
        %v313 = vld [vmem:[#allocation5 + $0xa4] sm:$0xf]
        %v314 = vld [vmem:[#allocation5 + $0xa8] sm:$0xf]
        %v315 = vld [vmem:[#allocation5 + $0xac] sm:$0xf]
        %v316 = vld [vmem:[#allocation5 + $0xb0] sm:$0xf]
        %v317 = vld [vmem:[#allocation5 + $0xb4] sm:$0xf]
        %v318 = vld [vmem:[#allocation5 + $0xb8] sm:$0xf]
        %v319 = vld [vmem:[#allocation5 + $0xbc] sm:$0xf]
        %v320 = vld [vmem:[#allocation5 + $0xc0] sm:$0xf]
        %v321 = vld [vmem:[#allocation5 + $0xc4] sm:$0xf]
        %v322 = vld [vmem:[#allocation5 + $0xc8] sm:$0xf]
        %v323 = vld [vmem:[#allocation5 + $0xcc] sm:$0xf]
        %v324 = vld [vmem:[#allocation5 + $0xd0] sm:$0xf]
        %v325 = vld [vmem:[#allocation5 + $0xd4] sm:$0xf]
        %v326 = vld [vmem:[#allocation5 + $0xd8] sm:$0xf]
        %v327 = vld [vmem:[#allocation5 + $0xdc] sm:$0xf]
        %v328 = vld [vmem:[#allocation5 + $0xe0] sm:$0xf]
        %v329 = vld [vmem:[#allocation5 + $0xe4] sm:$0xf]
        %v330 = vld [vmem:[#allocation5 + $0xe8] sm:$0xf]
        %v331 = vld [vmem:[#allocation5 + $0xec] sm:$0xf]
        %v332 = vld [vmem:[#allocation5 + $0xf0] sm:$0xf]
        %v333 = vld [vmem:[#allocation5 + $0xf4] sm:$0xf]
        %v334 = vld [vmem:[#allocation5 + $0xf8] sm:$0xf]
        %v335 = vld [vmem:[#allocation5 + $0xfc] sm:$0xf]
        %v336 = vld [vmem:[#allocation5 + $0x100] sm:$0xf]
        %v337 = vld [vmem:[#allocation5 + $0x104] sm:$0xf]
        %v338 = vld [vmem:[#allocation5 + $0x108] sm:$0xf]
        %v339 = vld [vmem:[#allocation5 + $0x10c] sm:$0xf]
        %v340 = vld [vmem:[#allocation5 + $0x110] sm:$0xf]
        %v341 = vld [vmem:[#allocation5 + $0x114] sm:$0xf]
        %v342 = vld [vmem:[#allocation5 + $0x118] sm:$0xf]
        %v343 = vld [vmem:[#allocation5 + $0x11c] sm:$0xf]
        %v344 = vld [vmem:[#allocation5 + $0x120] sm:$0xf]
        %v345 = vld [vmem:[#allocation5 + $0x124] sm:$0xf]
        %v346 = vld [vmem:[#allocation5 + $0x128] sm:$0xf]
        %v347 = vld [vmem:[#allocation5 + $0x12c] sm:$0xf]
        %v348 = vld [vmem:[#allocation5 + $0x130] sm:$0xf]
        %v349 = vld [vmem:[#allocation5 + $0x134] sm:$0xf]
        %v350 = vld [vmem:[#allocation5 + $0x138] sm:$0xf]
        %v351 = vld [vmem:[#allocation5 + $0x13c] sm:$0xf]
        %v352 = vld [vmem:[#allocation5 + $0x140] sm:$0xf]
        %v353 = vld [vmem:[#allocation5 + $0x144] sm:$0xf]
        %v354 = vld [vmem:[#allocation5 + $0x148] sm:$0xf]
        %v355 = vld [vmem:[#allocation5 + $0x14c] sm:$0xf]
        %v356 = vld [vmem:[#allocation5 + $0x150] sm:$0xf]
        %v357 = vld [vmem:[#allocation5 + $0x154] sm:$0xf]
        %v358 = vld [vmem:[#allocation5 + $0x158] sm:$0xf]
        %v359 = vld [vmem:[#allocation5 + $0x15c] sm:$0xf]
        %v360 = vld [vmem:[#allocation5 + $0x160] sm:$0xf]
        %v361 = vld [vmem:[#allocation5 + $0x164] sm:$0xf]
        %v362 = vld [vmem:[#allocation5 + $0x168] sm:$0xf]
        %v363 = vld [vmem:[#allocation5 + $0x16c] sm:$0xf]
        %v364 = vld [vmem:[#allocation5 + $0x170] sm:$0xf]
        %v365 = vld [vmem:[#allocation5 + $0x174] sm:$0xf]
        %v366 = vld [vmem:[#allocation5 + $0x178] sm:$0xf]
        %v367 = vld [vmem:[#allocation5 + $0x17c] sm:$0xf]
        %v368 = vld [vmem:[#allocation5 + $0x180] sm:$0xf]
        %v369 = vld [vmem:[#allocation5 + $0x184] sm:$0xf]
        %v370 = vld [vmem:[#allocation5 + $0x188] sm:$0xf]
        %v371 = vld [vmem:[#allocation5 + $0x18c] sm:$0xf]
        %v372 = vld [vmem:[#allocation5 + $0x190] sm:$0xf]
        %v373 = vld [vmem:[#allocation5 + $0x194] sm:$0xf]
        %v374 = vld [vmem:[#allocation5 + $0x198] sm:$0xf]
        %v375 = vld [vmem:[#allocation5 + $0x19c] sm:$0xf]
        %v376 = vld [vmem:[#allocation5 + $0x1a0] sm:$0xf]
        %v377 = vld [vmem:[#allocation5 + $0x1a4] sm:$0xf]
        %v378 = vld [vmem:[#allocation5 + $0x1a8] sm:$0xf]
        %v379 = vld [vmem:[#allocation5 + $0x1ac] sm:$0xf]
        %v380 = vld [vmem:[#allocation5 + $0x1b0] sm:$0xf]
        %v381 = vld [vmem:[#allocation5 + $0x1b4] sm:$0xf]
        %v382 = vld [vmem:[#allocation5 + $0x1b8] sm:$0xf]
        %v383 = vld [vmem:[#allocation5 + $0x1bc] sm:$0xf]
        %v384 = vld [vmem:[#allocation5 + $0x1c0] sm:$0xf]
        %v385 = vld [vmem:[#allocation5 + $0x1c4] sm:$0xf]
        %v386 = vld [vmem:[#allocation5 + $0x1c8] sm:$0xf]
        %v387 = vld [vmem:[#allocation5 + $0x1cc] sm:$0xf]
        %v388 = vld [vmem:[#allocation5 + $0x1d0] sm:$0xf]
        %v389 = vld [vmem:[#allocation5 + $0x1d4] sm:$0xf]
        %v390 = vld [vmem:[#allocation5 + $0x1d8] sm:$0xf]
        %v391 = vld [vmem:[#allocation5 + $0x1dc] sm:$0xf]
        %v392 = vld [vmem:[#allocation5 + $0x1e0] sm:$0xf]
        %v393 = vld [vmem:[#allocation5 + $0x1e4] sm:$0xf]
        %v394 = vld [vmem:[#allocation5 + $0x1e8] sm:$0xf]
        %v395 = vld [vmem:[#allocation5 + $0x1ec] sm:$0xf]
        %v396 = vld [vmem:[#allocation5 + $0x1f0] sm:$0xf]
        %v397 = vld [vmem:[#allocation5 + $0x1f4] sm:$0xf]
        %v398 = vld [vmem:[#allocation5 + $0x1f8] sm:$0xf]
        %v399 = vld [vmem:[#allocation5 + $0x1fc] sm:$0xf]
        %v400 = vld [vmem:[%s2] sm:$0x1]
        %v402 = vlaneseq
        %v403 = vshrl.u32 %v402, 7
        %v404 = vsub.s32 0, %v403
        %v405 = vrot.slane %v400, %v404
        %v471 = vunpack.c.l.b16 %v208
        %v472 = vunpack.c.h.b16 %v208
        %v473 = vunpack.c.l.b16 %v209
        %v474 = vunpack.c.h.b16 %v209
        %v475 = vunpack.c.l.b16 %v210
        %v476 = vunpack.c.h.b16 %v210
        %v477 = vunpack.c.l.b16 %v211
        %v478 = vunpack.c.h.b16 %v211
        %v479 = vunpack.c.l.b16 %v212
        %v480 = vunpack.c.h.b16 %v212
        %v481 = vunpack.c.l.b16 %v213
        %v482 = vunpack.c.h.b16 %v213
        %v483 = vunpack.c.l.b16 %v214
        %v484 = vunpack.c.h.b16 %v214
        %v485 = vunpack.c.l.b16 %v215
        %v486 = vunpack.c.h.b16 %v215
        %v487 = vunpack.c.l.b16 %v216
        %v488 = vunpack.c.h.b16 %v216
        %v489 = vunpack.c.l.b16 %v217
        %v490 = vunpack.c.h.b16 %v217
        %v491 = vunpack.c.l.b16 %v218
        %v492 = vunpack.c.h.b16 %v218
        %v493 = vunpack.c.l.b16 %v219
        %v494 = vunpack.c.h.b16 %v219
        %v495 = vunpack.c.l.b16 %v220
        %v496 = vunpack.c.h.b16 %v220
        %v497 = vunpack.c.l.b16 %v221
        %v498 = vunpack.c.h.b16 %v221
        %v499 = vunpack.c.l.b16 %v222
        %v500 = vunpack.c.h.b16 %v222
        %v501 = vunpack.c.l.b16 %v223
        %v502 = vunpack.c.h.b16 %v223
        %v503 = vunpack.c.l.b16 %v224
        %v504 = vunpack.c.h.b16 %v224
        %v505 = vunpack.c.l.b16 %v225
        %v506 = vunpack.c.h.b16 %v225
        %v507 = vunpack.c.l.b16 %v226
        %v508 = vunpack.c.h.b16 %v226
        %v509 = vunpack.c.l.b16 %v227
        %v510 = vunpack.c.h.b16 %v227
        %v511 = vunpack.c.l.b16 %v228
        %v512 = vunpack.c.h.b16 %v228
        %v513 = vunpack.c.l.b16 %v229
        %v514 = vunpack.c.h.b16 %v229
        %v515 = vunpack.c.l.b16 %v230
        %v516 = vunpack.c.h.b16 %v230
        %v517 = vunpack.c.l.b16 %v231
        %v518 = vunpack.c.h.b16 %v231
        %v519 = vunpack.c.l.b16 %v232
        %v520 = vunpack.c.h.b16 %v232
        %v521 = vunpack.c.l.b16 %v233
        %v522 = vunpack.c.h.b16 %v233
        %v523 = vunpack.c.l.b16 %v234
        %v524 = vunpack.c.h.b16 %v234
        %v525 = vunpack.c.l.b16 %v235
        %v526 = vunpack.c.h.b16 %v235
        %v527 = vunpack.c.l.b16 %v236
        %v528 = vunpack.c.h.b16 %v236
        %v529 = vunpack.c.l.b16 %v237
        %v530 = vunpack.c.h.b16 %v237
        %v531 = vunpack.c.l.b16 %v238
        %v532 = vunpack.c.h.b16 %v238
        %v533 = vunpack.c.l.b16 %v239
        %v534 = vunpack.c.h.b16 %v239
        %v535 = vunpack.c.l.b16 %v240
        %v536 = vunpack.c.h.b16 %v240
        %v537 = vunpack.c.l.b16 %v241
        %v538 = vunpack.c.h.b16 %v241
        %v539 = vunpack.c.l.b16 %v242
        %v540 = vunpack.c.h.b16 %v242
        %v541 = vunpack.c.l.b16 %v243
        %v542 = vunpack.c.h.b16 %v243
        %v543 = vunpack.c.l.b16 %v244
        %v544 = vunpack.c.h.b16 %v244
        %v545 = vunpack.c.l.b16 %v245
        %v546 = vunpack.c.h.b16 %v245
        %v547 = vunpack.c.l.b16 %v246
        %v548 = vunpack.c.h.b16 %v246
        %v549 = vunpack.c.l.b16 %v247
        %v550 = vunpack.c.h.b16 %v247
        %v551 = vunpack.c.l.b16 %v248
        %v552 = vunpack.c.h.b16 %v248
        %v553 = vunpack.c.l.b16 %v249
        %v554 = vunpack.c.h.b16 %v249
        %v555 = vunpack.c.l.b16 %v250
        %v556 = vunpack.c.h.b16 %v250
        %v557 = vunpack.c.l.b16 %v251
        %v558 = vunpack.c.h.b16 %v251
        %v559 = vunpack.c.l.b16 %v252
        %v560 = vunpack.c.h.b16 %v252
        %v561 = vunpack.c.l.b16 %v253
        %v562 = vunpack.c.h.b16 %v253
        %v563 = vunpack.c.l.b16 %v254
        %v564 = vunpack.c.h.b16 %v254
        %v565 = vunpack.c.l.b16 %v255
        %v566 = vunpack.c.h.b16 %v255
        %v567 = vunpack.c.l.b16 %v256
        %v568 = vunpack.c.h.b16 %v256
        %v569 = vunpack.c.l.b16 %v257
        %v570 = vunpack.c.h.b16 %v257
        %v571 = vunpack.c.l.b16 %v258
        %v572 = vunpack.c.h.b16 %v258
        %v573 = vunpack.c.l.b16 %v259
        %v574 = vunpack.c.h.b16 %v259
        %v575 = vunpack.c.l.b16 %v260
        %v576 = vunpack.c.h.b16 %v260
        %v577 = vunpack.c.l.b16 %v261
        %v578 = vunpack.c.h.b16 %v261
        %v579 = vunpack.c.l.b16 %v262
        %v580 = vunpack.c.h.b16 %v262
        %v581 = vunpack.c.l.b16 %v263
        %v582 = vunpack.c.h.b16 %v263
        %v583 = vunpack.c.l.b16 %v264
        %v584 = vunpack.c.h.b16 %v264
        %v585 = vunpack.c.l.b16 %v265
        %v586 = vunpack.c.h.b16 %v265
        %v587 = vunpack.c.l.b16 %v266
        %v588 = vunpack.c.h.b16 %v266
        %v589 = vunpack.c.l.b16 %v267
        %v590 = vunpack.c.h.b16 %v267
        %v591 = vunpack.c.l.b16 %v268
        %v592 = vunpack.c.h.b16 %v268
        %v593 = vunpack.c.l.b16 %v269
        %v594 = vunpack.c.h.b16 %v269
        %v595 = vunpack.c.l.b16 %v270
        %v596 = vunpack.c.h.b16 %v270
        %v597 = vunpack.c.l.b16 %v271
        %v598 = vunpack.c.h.b16 %v271
        %v599 = vpack.c.b16 %v479, %v471
        %v600 = vpack.c.b16 %v480, %v472
        %v601 = vpack.c.b16 %v481, %v473
        %v602 = vpack.c.b16 %v482, %v474
        %v603 = vpack.c.b16 %v483, %v475
        %v604 = vpack.c.b16 %v484, %v476
        %v605 = vpack.c.b16 %v485, %v477
        %v606 = vpack.c.b16 %v486, %v478
        %v607 = vpack.c.b16 %v495, %v487
        %v608 = vpack.c.b16 %v496, %v488
        %v609 = vpack.c.b16 %v497, %v489
        %v610 = vpack.c.b16 %v498, %v490
        %v611 = vpack.c.b16 %v499, %v491
        %v612 = vpack.c.b16 %v500, %v492
        %v613 = vpack.c.b16 %v501, %v493
        %v614 = vpack.c.b16 %v502, %v494
        %v615 = vpack.c.b16 %v511, %v503
        %v616 = vpack.c.b16 %v512, %v504
        %v617 = vpack.c.b16 %v513, %v505
        %v618 = vpack.c.b16 %v514, %v506
        %v619 = vpack.c.b16 %v515, %v507
        %v620 = vpack.c.b16 %v516, %v508
        %v621 = vpack.c.b16 %v517, %v509
        %v622 = vpack.c.b16 %v518, %v510
        %v623 = vpack.c.b16 %v527, %v519
        %v624 = vpack.c.b16 %v528, %v520
        %v625 = vpack.c.b16 %v529, %v521
        %v626 = vpack.c.b16 %v530, %v522
        %v627 = vpack.c.b16 %v531, %v523
        %v628 = vpack.c.b16 %v532, %v524
        %v629 = vpack.c.b16 %v533, %v525
        %v630 = vpack.c.b16 %v534, %v526
        %v631 = vpack.c.b16 %v543, %v535
        %v632 = vpack.c.b16 %v544, %v536
        %v633 = vpack.c.b16 %v545, %v537
        %v634 = vpack.c.b16 %v546, %v538
        %v635 = vpack.c.b16 %v547, %v539
        %v636 = vpack.c.b16 %v548, %v540
        %v637 = vpack.c.b16 %v549, %v541
        %v638 = vpack.c.b16 %v550, %v542
        %v639 = vpack.c.b16 %v559, %v551
        %v640 = vpack.c.b16 %v560, %v552
        %v641 = vpack.c.b16 %v561, %v553
        %v642 = vpack.c.b16 %v562, %v554
        %v643 = vpack.c.b16 %v563, %v555
        %v644 = vpack.c.b16 %v564, %v556
        %v645 = vpack.c.b16 %v565, %v557
        %v646 = vpack.c.b16 %v566, %v558
        %v647 = vpack.c.b16 %v575, %v567
        %v648 = vpack.c.b16 %v576, %v568
        %v649 = vpack.c.b16 %v577, %v569
        %v650 = vpack.c.b16 %v578, %v570
        %v651 = vpack.c.b16 %v579, %v571
        %v652 = vpack.c.b16 %v580, %v572
        %v653 = vpack.c.b16 %v581, %v573
        %v654 = vpack.c.b16 %v582, %v574
        %v655 = vpack.c.b16 %v591, %v583
        %v656 = vpack.c.b16 %v592, %v584
        %v657 = vpack.c.b16 %v593, %v585
        %v658 = vpack.c.b16 %v594, %v586
        %v659 = vpack.c.b16 %v595, %v587
        %v660 = vpack.c.b16 %v596, %v588
        %v661 = vpack.c.b16 %v597, %v589
        %v662 = vpack.c.b16 %v598, %v590
        %v855 = vunpack.c.l.b16 %v272
        %v856 = vunpack.c.l.b16 %v273
        %v857 = vunpack.c.l.b16 %v274
        %v858 = vunpack.c.l.b16 %v275
        %v859 = vunpack.c.l.b16 %v276
        %v860 = vunpack.c.l.b16 %v277
        %v861 = vunpack.c.l.b16 %v278
        %v862 = vunpack.c.l.b16 %v279
        %v863 = vunpack.c.l.b16 %v280
        %v864 = vunpack.c.l.b16 %v281
        %v865 = vunpack.c.l.b16 %v282
        %v866 = vunpack.c.l.b16 %v283
        %v867 = vunpack.c.l.b16 %v284
        %v868 = vunpack.c.l.b16 %v285
        %v869 = vunpack.c.l.b16 %v286
        %v870 = vunpack.c.l.b16 %v287
        %v871 = vunpack.c.l.b16 %v288
        %v872 = vunpack.c.l.b16 %v289
        %v873 = vunpack.c.l.b16 %v290
        %v874 = vunpack.c.l.b16 %v291
        %v875 = vunpack.c.l.b16 %v292
        %v876 = vunpack.c.l.b16 %v293
        %v877 = vunpack.c.l.b16 %v294
        %v878 = vunpack.c.l.b16 %v295
        %v879 = vunpack.c.l.b16 %v296
        %v880 = vunpack.c.l.b16 %v297
        %v881 = vunpack.c.l.b16 %v298
        %v882 = vunpack.c.l.b16 %v299
        %v883 = vunpack.c.l.b16 %v300
        %v884 = vunpack.c.l.b16 %v301
        %v885 = vunpack.c.l.b16 %v302
        %v886 = vunpack.c.l.b16 %v303
        %v887 = vunpack.c.l.b16 %v304
        %v888 = vunpack.c.l.b16 %v305
        %v889 = vunpack.c.l.b16 %v306
        %v890 = vunpack.c.l.b16 %v307
        %v891 = vunpack.c.l.b16 %v308
        %v892 = vunpack.c.l.b16 %v309
        %v893 = vunpack.c.l.b16 %v310
        %v894 = vunpack.c.l.b16 %v311
        %v895 = vunpack.c.l.b16 %v312
        %v896 = vunpack.c.l.b16 %v313
        %v897 = vunpack.c.l.b16 %v314
        %v898 = vunpack.c.l.b16 %v315
        %v899 = vunpack.c.l.b16 %v316
        %v900 = vunpack.c.l.b16 %v317
        %v901 = vunpack.c.l.b16 %v318
        %v902 = vunpack.c.l.b16 %v319
        %v903 = vunpack.c.l.b16 %v320
        %v904 = vunpack.c.l.b16 %v321
        %v905 = vunpack.c.l.b16 %v322
        %v906 = vunpack.c.l.b16 %v323
        %v907 = vunpack.c.l.b16 %v324
        %v908 = vunpack.c.l.b16 %v325
        %v909 = vunpack.c.l.b16 %v326
        %v910 = vunpack.c.l.b16 %v327
        %v911 = vunpack.c.l.b16 %v328
        %v912 = vunpack.c.l.b16 %v329
        %v913 = vunpack.c.l.b16 %v330
        %v914 = vunpack.c.l.b16 %v331
        %v915 = vunpack.c.l.b16 %v332
        %v916 = vunpack.c.l.b16 %v333
        %v917 = vunpack.c.l.b16 %v334
        %v918 = vunpack.c.l.b16 %v335
        %v919 = vunpack.c.l.b16 %v336
        %v920 = vunpack.c.l.b16 %v337
        %v921 = vunpack.c.l.b16 %v338
        %v922 = vunpack.c.l.b16 %v339
        %v923 = vunpack.c.l.b16 %v340
        %v924 = vunpack.c.l.b16 %v341
        %v925 = vunpack.c.l.b16 %v342
        %v926 = vunpack.c.l.b16 %v343
        %v927 = vunpack.c.l.b16 %v344
        %v928 = vunpack.c.l.b16 %v345
        %v929 = vunpack.c.l.b16 %v346
        %v930 = vunpack.c.l.b16 %v347
        %v931 = vunpack.c.l.b16 %v348
        %v932 = vunpack.c.l.b16 %v349
        %v933 = vunpack.c.l.b16 %v350
        %v934 = vunpack.c.l.b16 %v351
        %v935 = vunpack.c.l.b16 %v352
        %v936 = vunpack.c.l.b16 %v353
        %v937 = vunpack.c.l.b16 %v354
        %v938 = vunpack.c.l.b16 %v355
        %v939 = vunpack.c.l.b16 %v356
        %v940 = vunpack.c.l.b16 %v357
        %v941 = vunpack.c.l.b16 %v358
        %v942 = vunpack.c.l.b16 %v359
        %v943 = vunpack.c.l.b16 %v360
        %v944 = vunpack.c.l.b16 %v361
        %v945 = vunpack.c.l.b16 %v362
        %v946 = vunpack.c.l.b16 %v363
        %v947 = vunpack.c.l.b16 %v364
        %v948 = vunpack.c.l.b16 %v365
        %v949 = vunpack.c.l.b16 %v366
        %v950 = vunpack.c.l.b16 %v367
        %v951 = vunpack.c.l.b16 %v368
        %v952 = vunpack.c.l.b16 %v369
        %v953 = vunpack.c.l.b16 %v370
        %v954 = vunpack.c.l.b16 %v371
        %v955 = vunpack.c.l.b16 %v372
        %v956 = vunpack.c.l.b16 %v373
        %v957 = vunpack.c.l.b16 %v374
        %v958 = vunpack.c.l.b16 %v375
        %v959 = vunpack.c.l.b16 %v376
        %v960 = vunpack.c.l.b16 %v377
        %v961 = vunpack.c.l.b16 %v378
        %v962 = vunpack.c.l.b16 %v379
        %v963 = vunpack.c.l.b16 %v380
        %v964 = vunpack.c.l.b16 %v381
        %v965 = vunpack.c.l.b16 %v382
        %v966 = vunpack.c.l.b16 %v383
        %v967 = vunpack.c.l.b16 %v384
        %v968 = vunpack.c.l.b16 %v385
        %v969 = vunpack.c.l.b16 %v386
        %v970 = vunpack.c.l.b16 %v387
        %v971 = vunpack.c.l.b16 %v388
        %v972 = vunpack.c.l.b16 %v389
        %v973 = vunpack.c.l.b16 %v390
        %v974 = vunpack.c.l.b16 %v391
        %v975 = vunpack.c.l.b16 %v392
        %v976 = vunpack.c.l.b16 %v393
        %v977 = vunpack.c.l.b16 %v394
        %v978 = vunpack.c.l.b16 %v395
        %v979 = vunpack.c.l.b16 %v396
        %v980 = vunpack.c.l.b16 %v397
        %v981 = vunpack.c.l.b16 %v398
        %v982 = vunpack.c.l.b16 %v399
        %v983 = vpack.c.b16 %v856, %v855
        %v984 = vpack.c.b16 %v858, %v857
        %v985 = vpack.c.b16 %v860, %v859
        %v986 = vpack.c.b16 %v862, %v861
        %v987 = vpack.c.b16 %v864, %v863
        %v988 = vpack.c.b16 %v866, %v865
        %v989 = vpack.c.b16 %v868, %v867
        %v990 = vpack.c.b16 %v870, %v869
        %v991 = vpack.c.b16 %v872, %v871
        %v992 = vpack.c.b16 %v874, %v873
        %v993 = vpack.c.b16 %v876, %v875
        %v994 = vpack.c.b16 %v878, %v877
        %v995 = vpack.c.b16 %v880, %v879
        %v996 = vpack.c.b16 %v882, %v881
        %v997 = vpack.c.b16 %v884, %v883
        %v998 = vpack.c.b16 %v886, %v885
        %v999 = vpack.c.b16 %v888, %v887
        %v1000 = vpack.c.b16 %v890, %v889
        %v1001 = vpack.c.b16 %v892, %v891
        %v1002 = vpack.c.b16 %v894, %v893
        %v1003 = vpack.c.b16 %v896, %v895
        %v1004 = vpack.c.b16 %v898, %v897
        %v1005 = vpack.c.b16 %v900, %v899
        %v1006 = vpack.c.b16 %v902, %v901
        %v1007 = vpack.c.b16 %v904, %v903
        %v1008 = vpack.c.b16 %v906, %v905
        %v1009 = vpack.c.b16 %v908, %v907
        %v1010 = vpack.c.b16 %v910, %v909
        %v1011 = vpack.c.b16 %v912, %v911
        %v1012 = vpack.c.b16 %v914, %v913
        %v1013 = vpack.c.b16 %v916, %v915
        %v1014 = vpack.c.b16 %v918, %v917
        %v1015 = vpack.c.b16 %v920, %v919
        %v1016 = vpack.c.b16 %v922, %v921
        %v1017 = vpack.c.b16 %v924, %v923
        %v1018 = vpack.c.b16 %v926, %v925
        %v1019 = vpack.c.b16 %v928, %v927
        %v1020 = vpack.c.b16 %v930, %v929
        %v1021 = vpack.c.b16 %v932, %v931
        %v1022 = vpack.c.b16 %v934, %v933
        %v1023 = vpack.c.b16 %v936, %v935
        %v1024 = vpack.c.b16 %v938, %v937
        %v1025 = vpack.c.b16 %v940, %v939
        %v1026 = vpack.c.b16 %v942, %v941
        %v1027 = vpack.c.b16 %v944, %v943
        %v1028 = vpack.c.b16 %v946, %v945
        %v1029 = vpack.c.b16 %v948, %v947
        %v1030 = vpack.c.b16 %v950, %v949
        %v1031 = vpack.c.b16 %v952, %v951
        %v1032 = vpack.c.b16 %v954, %v953
        %v1033 = vpack.c.b16 %v956, %v955
        %v1034 = vpack.c.b16 %v958, %v957
        %v1035 = vpack.c.b16 %v960, %v959
        %v1036 = vpack.c.b16 %v962, %v961
        %v1037 = vpack.c.b16 %v964, %v963
        %v1038 = vpack.c.b16 %v966, %v965
        %v1039 = vpack.c.b16 %v968, %v967
        %v1040 = vpack.c.b16 %v970, %v969
        %v1041 = vpack.c.b16 %v972, %v971
        %v1042 = vpack.c.b16 %v974, %v973
        %v1043 = vpack.c.b16 %v976, %v975
        %v1044 = vpack.c.b16 %v978, %v977
        %v1045 = vpack.c.b16 %v980, %v979
        %v1046 = vpack.c.b16 %v982, %v981
        %1111 = vmatprep.subr.bf16.mxu0 0
        %1112 = vmatpush1.bf16.msra.mxu0 %v983
        %1113 = vmatprep.subr.bf16.mxu0 0
        %1114 = vmatpush1.bf16.msra.mxu0 %v984
        %1115 = vmatprep.subr.bf16.mxu0 0
        %1116 = vmatpush1.bf16.msra.mxu0 %v985
        %1117 = vmatprep.subr.bf16.mxu0 0
        %1118 = vmatpush1.bf16.msra.mxu0 %v986
        %1119 = vmatprep.subr.bf16.mxu0 0
        %1120 = vmatpush1.bf16.msra.mxu0 %v987
        %1121 = vmatprep.subr.bf16.mxu0 0
        %1122 = vmatpush1.bf16.msra.mxu0 %v988
        %1123 = vmatprep.subr.bf16.mxu0 0
        %1124 = vmatpush1.bf16.msra.mxu0 %v989
        %1125 = vmatprep.subr.bf16.mxu0 0
        %1126 = vmatpush1.bf16.msra.mxu0 %v990
        %1127 = vmatprep.subr.bf16.mxu0 0
        %1128 = vmatpush1.bf16.msra.mxu0 %v991
        %1129 = vmatprep.subr.bf16.mxu0 0
        %1130 = vmatpush1.bf16.msra.mxu0 %v992
        %1131 = vmatprep.subr.bf16.mxu0 0
        %1132 = vmatpush1.bf16.msra.mxu0 %v993
        %1133 = vmatprep.subr.bf16.mxu0 0
        %1134 = vmatpush1.bf16.msra.mxu0 %v994
        %1135 = vmatprep.subr.bf16.mxu0 0
        %1136 = vmatpush1.bf16.msra.mxu0 %v995
        %1137 = vmatprep.subr.bf16.mxu0 0
        %1138 = vmatpush1.bf16.msra.mxu0 %v996
        %1139 = vmatprep.subr.bf16.mxu0 0
        %1140 = vmatpush1.bf16.msra.mxu0 %v997
        %1141 = vmatprep.subr.bf16.mxu0 0
        %1142 = vmatpush1.bf16.msra.mxu0 %v998
        %1143 = vmatprep.mubr.bf16.mxu0 %v600
        %1144 = vmatmul.mubr.bf16.gmra.mrb[0].mxu0 %v599
        %v1145 = vpop.f32.mrb[0].mxu0
        %v1146 = vadd.f32 %v405, %v1145
        %v1147 = vpop.f32.mrb[0].mxu0
        %v1148 = vpop.f32.mrb[0].mxu0
        %v1149 = vadd.f32 %v405, %v1148
        %v1150 = vpop.f32.mrb[0].mxu0
        %1151 = vmatprep.mubr.bf16.mxu0 %v608
        %1152 = vmatmul.mubr.bf16.gmra.mrb[0].mxu0 %v607
        %v1153 = vpop.f32.mrb[0].mxu0
        %v1154 = vadd.f32 %v405, %v1153
        %v1155 = vpop.f32.mrb[0].mxu0
        %v1156 = vpop.f32.mrb[0].mxu0
        %v1157 = vadd.f32 %v405, %v1156
        %v1158 = vpop.f32.mrb[0].mxu0
        %1159 = vmatprep.mubr.bf16.mxu0 %v616
        %1160 = vmatmul.mubr.bf16.gmra.mrb[0].mxu0 %v615
        %v1161 = vpop.f32.mrb[0].mxu0
        %v1162 = vadd.f32 %v405, %v1161
        %v1163 = vpop.f32.mrb[0].mxu0
        %v1164 = vpop.f32.mrb[0].mxu0
        %v1165 = vadd.f32 %v405, %v1164
        %v1166 = vpop.f32.mrb[0].mxu0
        %1167 = vmatprep.mubr.bf16.mxu0 %v624
        %1168 = vmatmul.mubr.bf16.gmra.mrb[0].mxu0 %v623
        %v1169 = vpop.f32.mrb[0].mxu0
        %v1170 = vadd.f32 %v405, %v1169
        %v1171 = vpop.f32.mrb[0].mxu0
        %v1172 = vpop.f32.mrb[0].mxu0
        %v1173 = vadd.f32 %v405, %v1172
        %v1174 = vpop.f32.mrb[0].mxu0
        %1175 = vmatprep.mubr.bf16.mxu0 %v632
        %1176 = vmatmul.mubr.bf16.gmra.mrb[0].mxu0 %v631
        %v1177 = vpop.f32.mrb[0].mxu0
        %v1178 = vadd.f32 %v405, %v1177
        %v1179 = vpop.f32.mrb[0].mxu0
        %v1180 = vpop.f32.mrb[0].mxu0
        %v1181 = vadd.f32 %v405, %v1180
        %v1182 = vpop.f32.mrb[0].mxu0
        %1183 = vmatprep.mubr.bf16.mxu0 %v640
        %1184 = vmatmul.mubr.bf16.gmra.mrb[0].mxu0 %v639
        %v1185 = vpop.f32.mrb[0].mxu0
        %v1186 = vadd.f32 %v405, %v1185
        %v1187 = vpop.f32.mrb[0].mxu0
        %v1188 = vpop.f32.mrb[0].mxu0
        %v1189 = vadd.f32 %v405, %v1188
        %v1190 = vpop.f32.mrb[0].mxu0
        %1191 = vmatprep.mubr.bf16.mxu0 %v648
        %1192 = vmatmul.mubr.bf16.gmra.mrb[0].mxu0 %v647
        %v1193 = vpop.f32.mrb[0].mxu0
        %v1194 = vadd.f32 %v405, %v1193
        %v1195 = vpop.f32.mrb[0].mxu0
        %v1196 = vpop.f32.mrb[0].mxu0
        %v1197 = vadd.f32 %v405, %v1196
        %v1198 = vpop.f32.mrb[0].mxu0
        %1199 = vmatprep.mubr.bf16.mxu0 %v656
        %1200 = vmatmul.mubr.bf16.gmra.mrb[0].mxu0 %v655
        %v1201 = vpop.f32.mrb[0].mxu0
        %v1202 = vadd.f32 %v405, %v1201
        %v1203 = vpop.f32.mrb[0].mxu0
        %v1204 = vpop.f32.mrb[0].mxu0
        %v1205 = vadd.f32 %v405, %v1204
        %v1206 = vpop.f32.mrb[0].mxu0
        %1207 = vdwg.mxu0
        %1208 = vmatprep.subr.bf16.mxu0 0
        %1209 = vmatpush1.bf16.msra.mxu0 %v999
        %1210 = vmatprep.subr.bf16.mxu0 0
        %1211 = vmatpush1.bf16.msra.mxu0 %v1000
        %1212 = vmatprep.subr.bf16.mxu0 0
        %1213 = vmatpush1.bf16.msra.mxu0 %v1001
        %1214 = vmatprep.subr.bf16.mxu0 0
        %1215 = vmatpush1.bf16.msra.mxu0 %v1002
        %1216 = vmatprep.subr.bf16.mxu0 0
        %1217 = vmatpush1.bf16.msra.mxu0 %v1003
        %1218 = vmatprep.subr.bf16.mxu0 0
        %1219 = vmatpush1.bf16.msra.mxu0 %v1004
        %1220 = vmatprep.subr.bf16.mxu0 0
        %1221 = vmatpush1.bf16.msra.mxu0 %v1005
        %1222 = vmatprep.subr.bf16.mxu0 0
        %1223 = vmatpush1.bf16.msra.mxu0 %v1006
        %1224 = vmatprep.subr.bf16.mxu0 0
        %1225 = vmatpush1.bf16.msra.mxu0 %v1007
        %1226 = vmatprep.subr.bf16.mxu0 0
        %1227 = vmatpush1.bf16.msra.mxu0 %v1008
        %1228 = vmatprep.subr.bf16.mxu0 0
        %1229 = vmatpush1.bf16.msra.mxu0 %v1009
        %1230 = vmatprep.subr.bf16.mxu0 0
        %1231 = vmatpush1.bf16.msra.mxu0 %v1010
        %1232 = vmatprep.subr.bf16.mxu0 0
        %1233 = vmatpush1.bf16.msra.mxu0 %v1011
        %1234 = vmatprep.subr.bf16.mxu0 0
        %1235 = vmatpush1.bf16.msra.mxu0 %v1012
        %1236 = vmatprep.subr.bf16.mxu0 0
        %1237 = vmatpush1.bf16.msra.mxu0 %v1013
        %1238 = vmatprep.subr.bf16.mxu0 0
        %1239 = vmatpush1.bf16.msra.mxu0 %v1014
        %1240 = vmatprep.mubr.bf16.mxu0 %v602
        %1241 = vmatmul.mubr.bf16.gmra.mrb[0].mxu0 %v601
        %v1242 = vpop.f32.mrb[0].mxu0
        %v1243 = vadd.f32 %v1146, %v1242
        %v1244 = vpop.f32.mrb[0].mxu0
        %v1245 = vpop.f32.mrb[0].mxu0
        %v1246 = vadd.f32 %v1149, %v1245
        %v1247 = vpop.f32.mrb[0].mxu0
        %1248 = vmatprep.mubr.bf16.mxu0 %v610
        %1249 = vmatmul.mubr.bf16.gmra.mrb[0].mxu0 %v609
        %v1250 = vpop.f32.mrb[0].mxu0
        %v1251 = vadd.f32 %v1154, %v1250
        %v1252 = vpop.f32.mrb[0].mxu0
        %v1253 = vpop.f32.mrb[0].mxu0
        %v1254 = vadd.f32 %v1157, %v1253
        %v1255 = vpop.f32.mrb[0].mxu0
        %1256 = vmatprep.mubr.bf16.mxu0 %v618
        %1257 = vmatmul.mubr.bf16.gmra.mrb[0].mxu0 %v617
        %v1258 = vpop.f32.mrb[0].mxu0
        %v1259 = vadd.f32 %v1162, %v1258
        %v1260 = vpop.f32.mrb[0].mxu0
        %v1261 = vpop.f32.mrb[0].mxu0
        %v1262 = vadd.f32 %v1165, %v1261
        %v1263 = vpop.f32.mrb[0].mxu0
        %1264 = vmatprep.mubr.bf16.mxu0 %v626
        %1265 = vmatmul.mubr.bf16.gmra.mrb[0].mxu0 %v625
        %v1266 = vpop.f32.mrb[0].mxu0
        %v1267 = vadd.f32 %v1170, %v1266
        %v1268 = vpop.f32.mrb[0].mxu0
        %v1269 = vpop.f32.mrb[0].mxu0
        %v1270 = vadd.f32 %v1173, %v1269
        %v1271 = vpop.f32.mrb[0].mxu0
        %1272 = vmatprep.mubr.bf16.mxu0 %v634
        %1273 = vmatmul.mubr.bf16.gmra.mrb[0].mxu0 %v633
        %v1274 = vpop.f32.mrb[0].mxu0
        %v1275 = vadd.f32 %v1178, %v1274
        %v1276 = vpop.f32.mrb[0].mxu0
        %v1277 = vpop.f32.mrb[0].mxu0
        %v1278 = vadd.f32 %v1181, %v1277
        %v1279 = vpop.f32.mrb[0].mxu0
        %1280 = vmatprep.mubr.bf16.mxu0 %v642
        %1281 = vmatmul.mubr.bf16.gmra.mrb[0].mxu0 %v641
        %v1282 = vpop.f32.mrb[0].mxu0
        %v1283 = vadd.f32 %v1186, %v1282
        %v1284 = vpop.f32.mrb[0].mxu0
        %v1285 = vpop.f32.mrb[0].mxu0
        %v1286 = vadd.f32 %v1189, %v1285
        %v1287 = vpop.f32.mrb[0].mxu0
        %1288 = vmatprep.mubr.bf16.mxu0 %v650
        %1289 = vmatmul.mubr.bf16.gmra.mrb[0].mxu0 %v649
        %v1290 = vpop.f32.mrb[0].mxu0
        %v1291 = vadd.f32 %v1194, %v1290
        %v1292 = vpop.f32.mrb[0].mxu0
        %v1293 = vpop.f32.mrb[0].mxu0
        %v1294 = vadd.f32 %v1197, %v1293
        %v1295 = vpop.f32.mrb[0].mxu0
        %1296 = vmatprep.mubr.bf16.mxu0 %v658
        %1297 = vmatmul.mubr.bf16.gmra.mrb[0].mxu0 %v657
        %v1298 = vpop.f32.mrb[0].mxu0
        %v1299 = vadd.f32 %v1202, %v1298
        %v1300 = vpop.f32.mrb[0].mxu0
        %v1301 = vpop.f32.mrb[0].mxu0
        %v1302 = vadd.f32 %v1205, %v1301
        %v1303 = vpop.f32.mrb[0].mxu0
        %1304 = vdwg.mxu0
        %1305 = vmatprep.subr.bf16.mxu0 0
        %1306 = vmatpush1.bf16.msra.mxu0 %v1015
        %1307 = vmatprep.subr.bf16.mxu0 0
        %1308 = vmatpush1.bf16.msra.mxu0 %v1016
        %1309 = vmatprep.subr.bf16.mxu0 0
        %1310 = vmatpush1.bf16.msra.mxu0 %v1017
        %1311 = vmatprep.subr.bf16.mxu0 0
        %1312 = vmatpush1.bf16.msra.mxu0 %v1018
        %1313 = vmatprep.subr.bf16.mxu0 0
        %1314 = vmatpush1.bf16.msra.mxu0 %v1019
        %1315 = vmatprep.subr.bf16.mxu0 0
        %1316 = vmatpush1.bf16.msra.mxu0 %v1020
        %1317 = vmatprep.subr.bf16.mxu0 0
        %1318 = vmatpush1.bf16.msra.mxu0 %v1021
        %1319 = vmatprep.subr.bf16.mxu0 0
        %1320 = vmatpush1.bf16.msra.mxu0 %v1022
        %1321 = vmatprep.subr.bf16.mxu0 0
        %1322 = vmatpush1.bf16.msra.mxu0 %v1023
        %1323 = vmatprep.subr.bf16.mxu0 0
        %1324 = vmatpush1.bf16.msra.mxu0 %v1024
        %1325 = vmatprep.subr.bf16.mxu0 0
        %1326 = vmatpush1.bf16.msra.mxu0 %v1025
        %1327 = vmatprep.subr.bf16.mxu0 0
        %1328 = vmatpush1.bf16.msra.mxu0 %v1026
        %1329 = vmatprep.subr.bf16.mxu0 0
        %1330 = vmatpush1.bf16.msra.mxu0 %v1027
        %1331 = vmatprep.subr.bf16.mxu0 0
        %1332 = vmatpush1.bf16.msra.mxu0 %v1028
        %1333 = vmatprep.subr.bf16.mxu0 0
        %1334 = vmatpush1.bf16.msra.mxu0 %v1029
        %1335 = vmatprep.subr.bf16.mxu0 0
        %1336 = vmatpush1.bf16.msra.mxu0 %v1030
        %1337 = vmatprep.mubr.bf16.mxu0 %v604
        %1338 = vmatmul.mubr.bf16.gmra.mrb[0].mxu0 %v603
        %v1339 = vpop.f32.mrb[0].mxu0
        %v1340 = vadd.f32 %v1243, %v1339
        %v1341 = vpop.f32.mrb[0].mxu0
        %v1342 = vpop.f32.mrb[0].mxu0
        %v1343 = vadd.f32 %v1246, %v1342
        %v1344 = vpop.f32.mrb[0].mxu0
        %1345 = vmatprep.mubr.bf16.mxu0 %v612
        %1346 = vmatmul.mubr.bf16.gmra.mrb[0].mxu0 %v611
        %v1347 = vpop.f32.mrb[0].mxu0
        %v1348 = vadd.f32 %v1251, %v1347
        %v1349 = vpop.f32.mrb[0].mxu0
        %v1350 = vpop.f32.mrb[0].mxu0
        %v1351 = vadd.f32 %v1254, %v1350
        %v1352 = vpop.f32.mrb[0].mxu0
        %1353 = vmatprep.mubr.bf16.mxu0 %v620
        %1354 = vmatmul.mubr.bf16.gmra.mrb[0].mxu0 %v619
        %v1355 = vpop.f32.mrb[0].mxu0
        %v1356 = vadd.f32 %v1259, %v1355
        %v1357 = vpop.f32.mrb[0].mxu0
        %v1358 = vpop.f32.mrb[0].mxu0
        %v1359 = vadd.f32 %v1262, %v1358
        %v1360 = vpop.f32.mrb[0].mxu0
        %1361 = vmatprep.mubr.bf16.mxu0 %v628
        %1362 = vmatmul.mubr.bf16.gmra.mrb[0].mxu0 %v627
        %v1363 = vpop.f32.mrb[0].mxu0
        %v1364 = vadd.f32 %v1267, %v1363
        %v1365 = vpop.f32.mrb[0].mxu0
        %v1366 = vpop.f32.mrb[0].mxu0
        %v1367 = vadd.f32 %v1270, %v1366
        %v1368 = vpop.f32.mrb[0].mxu0
        %1369 = vmatprep.mubr.bf16.mxu0 %v636
        %1370 = vmatmul.mubr.bf16.gmra.mrb[0].mxu0 %v635
        %v1371 = vpop.f32.mrb[0].mxu0
        %v1372 = vadd.f32 %v1275, %v1371
        %v1373 = vpop.f32.mrb[0].mxu0
        %v1374 = vpop.f32.mrb[0].mxu0
        %v1375 = vadd.f32 %v1278, %v1374
        %v1376 = vpop.f32.mrb[0].mxu0
        %1377 = vmatprep.mubr.bf16.mxu0 %v644
        %1378 = vmatmul.mubr.bf16.gmra.mrb[0].mxu0 %v643
        %v1379 = vpop.f32.mrb[0].mxu0
        %v1380 = vadd.f32 %v1283, %v1379
        %v1381 = vpop.f32.mrb[0].mxu0
        %v1382 = vpop.f32.mrb[0].mxu0
        %v1383 = vadd.f32 %v1286, %v1382
        %v1384 = vpop.f32.mrb[0].mxu0
        %1385 = vmatprep.mubr.bf16.mxu0 %v652
        %1386 = vmatmul.mubr.bf16.gmra.mrb[0].mxu0 %v651
        %v1387 = vpop.f32.mrb[0].mxu0
        %v1388 = vadd.f32 %v1291, %v1387
        %v1389 = vpop.f32.mrb[0].mxu0
        %v1390 = vpop.f32.mrb[0].mxu0
        %v1391 = vadd.f32 %v1294, %v1390
        %v1392 = vpop.f32.mrb[0].mxu0
        %1393 = vmatprep.mubr.bf16.mxu0 %v660
        %1394 = vmatmul.mubr.bf16.gmra.mrb[0].mxu0 %v659
        %v1395 = vpop.f32.mrb[0].mxu0
        %v1396 = vadd.f32 %v1299, %v1395
        %v1397 = vpop.f32.mrb[0].mxu0
        %v1398 = vpop.f32.mrb[0].mxu0
        %v1399 = vadd.f32 %v1302, %v1398
        %v1400 = vpop.f32.mrb[0].mxu0
        %1401 = vdwg.mxu0
        %1402 = vmatprep.subr.bf16.mxu0 0
        %1403 = vmatpush1.bf16.msra.mxu0 %v1031
        %1404 = vmatprep.subr.bf16.mxu0 0
        %1405 = vmatpush1.bf16.msra.mxu0 %v1032
        %1406 = vmatprep.subr.bf16.mxu0 0
        %1407 = vmatpush1.bf16.msra.mxu0 %v1033
        %1408 = vmatprep.subr.bf16.mxu0 0
        %1409 = vmatpush1.bf16.msra.mxu0 %v1034
        %1410 = vmatprep.subr.bf16.mxu0 0
        %1411 = vmatpush1.bf16.msra.mxu0 %v1035
        %1412 = vmatprep.subr.bf16.mxu0 0
        %1413 = vmatpush1.bf16.msra.mxu0 %v1036
        %1414 = vmatprep.subr.bf16.mxu0 0
        %1415 = vmatpush1.bf16.msra.mxu0 %v1037
        %1416 = vmatprep.subr.bf16.mxu0 0
        %1417 = vmatpush1.bf16.msra.mxu0 %v1038
        %1418 = vmatprep.subr.bf16.mxu0 0
        %1419 = vmatpush1.bf16.msra.mxu0 %v1039
        %1420 = vmatprep.subr.bf16.mxu0 0
        %1421 = vmatpush1.bf16.msra.mxu0 %v1040
        %1422 = vmatprep.subr.bf16.mxu0 0
        %1423 = vmatpush1.bf16.msra.mxu0 %v1041
        %1424 = vmatprep.subr.bf16.mxu0 0
        %1425 = vmatpush1.bf16.msra.mxu0 %v1042
        %1426 = vmatprep.subr.bf16.mxu0 0
        %1427 = vmatpush1.bf16.msra.mxu0 %v1043
        %1428 = vmatprep.subr.bf16.mxu0 0
        %1429 = vmatpush1.bf16.msra.mxu0 %v1044
        %1430 = vmatprep.subr.bf16.mxu0 0
        %1431 = vmatpush1.bf16.msra.mxu0 %v1045
        %1432 = vmatprep.subr.bf16.mxu0 0
        %1433 = vmatpush1.bf16.msra.mxu0 %v1046
        %1434 = vmatprep.mubr.bf16.mxu0 %v606
        %1435 = vmatmul.mubr.bf16.gmra.mrb[0].mxu0 %v605
        %v1436 = vpop.f32.mrb[0].mxu0
        %v1437 = vadd.f32 %v1340, %v1436
        %v1438 = vpop.f32.mrb[0].mxu0
        %v1439 = vpop.f32.mrb[0].mxu0
        %v1440 = vadd.f32 %v1343, %v1439
        %v1441 = vpop.f32.mrb[0].mxu0
        %1442 = vmatprep.mubr.bf16.mxu0 %v614
        %1443 = vmatmul.mubr.bf16.gmra.mrb[0].mxu0 %v613
        %v1444 = vpop.f32.mrb[0].mxu0
        %v1445 = vadd.f32 %v1348, %v1444
        %v1446 = vpop.f32.mrb[0].mxu0
        %v1447 = vpop.f32.mrb[0].mxu0
        %v1448 = vadd.f32 %v1351, %v1447
        %v1449 = vpop.f32.mrb[0].mxu0
        %1450 = vmatprep.mubr.bf16.mxu0 %v622
        %1451 = vmatmul.mubr.bf16.gmra.mrb[0].mxu0 %v621
        %v1452 = vpop.f32.mrb[0].mxu0
        %v1453 = vadd.f32 %v1356, %v1452
        %v1454 = vpop.f32.mrb[0].mxu0
        %v1455 = vpop.f32.mrb[0].mxu0
        %v1456 = vadd.f32 %v1359, %v1455
        %v1457 = vpop.f32.mrb[0].mxu0
        %1458 = vmatprep.mubr.bf16.mxu0 %v630
        %1459 = vmatmul.mubr.bf16.gmra.mrb[0].mxu0 %v629
        %v1460 = vpop.f32.mrb[0].mxu0
        %v1461 = vadd.f32 %v1364, %v1460
        %v1462 = vpop.f32.mrb[0].mxu0
        %v1463 = vpop.f32.mrb[0].mxu0
        %v1464 = vadd.f32 %v1367, %v1463
        %v1465 = vpop.f32.mrb[0].mxu0
        %1466 = vmatprep.mubr.bf16.mxu0 %v638
        %1467 = vmatmul.mubr.bf16.gmra.mrb[0].mxu0 %v637
        %v1468 = vpop.f32.mrb[0].mxu0
        %v1469 = vadd.f32 %v1372, %v1468
        %v1470 = vpop.f32.mrb[0].mxu0
        %v1471 = vpop.f32.mrb[0].mxu0
        %v1472 = vadd.f32 %v1375, %v1471
        %v1473 = vpop.f32.mrb[0].mxu0
        %1474 = vmatprep.mubr.bf16.mxu0 %v646
        %1475 = vmatmul.mubr.bf16.gmra.mrb[0].mxu0 %v645
        %v1476 = vpop.f32.mrb[0].mxu0
        %v1477 = vadd.f32 %v1380, %v1476
        %v1478 = vpop.f32.mrb[0].mxu0
        %v1479 = vpop.f32.mrb[0].mxu0
        %v1480 = vadd.f32 %v1383, %v1479
        %v1481 = vpop.f32.mrb[0].mxu0
        %1482 = vmatprep.mubr.bf16.mxu0 %v654
        %1483 = vmatmul.mubr.bf16.gmra.mrb[0].mxu0 %v653
        %v1484 = vpop.f32.mrb[0].mxu0
        %v1485 = vadd.f32 %v1388, %v1484
        %v1486 = vpop.f32.mrb[0].mxu0
        %v1487 = vpop.f32.mrb[0].mxu0
        %v1488 = vadd.f32 %v1391, %v1487
        %v1489 = vpop.f32.mrb[0].mxu0
        %1490 = vmatprep.mubr.bf16.mxu0 %v662
        %1491 = vmatmul.mubr.bf16.gmra.mrb[0].mxu0 %v661
        %v1492 = vpop.f32.mrb[0].mxu0
        %v1493 = vadd.f32 %v1396, %v1492
        %v1494 = vpop.f32.mrb[0].mxu0
        %v1495 = vpop.f32.mrb[0].mxu0
        %v1496 = vadd.f32 %v1399, %v1495
        %v1497 = vpop.f32.mrb[0].mxu0
        %1498 = vdwg.mxu0
        %1499 = vst [vmem:[%s204] sm:$0xff] %v1437
        %1500 = vst [vmem:[%s204 + $0x8] sm:$0xff] %v1440
        %1501 = vst [vmem:[%s204 + $0x10] sm:$0xff] %v1445
        %1502 = vst [vmem:[%s204 + $0x18] sm:$0xff] %v1448
        %1503 = vst [vmem:[%s204 + $0x20] sm:$0xff] %v1453
        %1504 = vst [vmem:[%s204 + $0x28] sm:$0xff] %v1456
        %1505 = vst [vmem:[%s204 + $0x30] sm:$0xff] %v1461
        %1506 = vst [vmem:[%s204 + $0x38] sm:$0xff] %v1464
        %1507 = vst [vmem:[%s204 + $0x40] sm:$0xff] %v1469
        %1508 = vst [vmem:[%s204 + $0x48] sm:$0xff] %v1472
        %1509 = vst [vmem:[%s204 + $0x50] sm:$0xff] %v1477
        %1510 = vst [vmem:[%s204 + $0x58] sm:$0xff] %v1480
        %1511 = vst [vmem:[%s204 + $0x60] sm:$0xff] %v1485
        %1512 = vst [vmem:[%s204 + $0x68] sm:$0xff] %v1488
        %1513 = vst [vmem:[%s204 + $0x70] sm:$0xff] %v1493
        %1514 = vst [vmem:[%s204 + $0x78] sm:$0xff] %v1496
        %s1515 = sand.u32 %s97, 1
        %s1516 = scalar_lea.sflag [#allocation4], %s1515
        %s1517 = sand.u32 %s97, 1
        %s1518 = smul.addr %s1517, 128
        %s1519 = scalar_lea.vmem [#allocation7], %s1518
        // Predicated region
        $region41: #{tpu_custom_call.1} parent=31 // pred_check
          %p1520 = pneg %p107
        $region42: #{tpu_custom_call.1} parent=31 // pred_check_branch
          %1522 = sbr.rel (%p1520) target = $region44
        $region43: #{tpu_custom_call.1} parent=31 // pred_region
          %s1523 = smul.u32 16, %s21
          %s1525 = ssub.s32 2048, 2048
          %1526 = vsyncadd %s1516, %s1525
          %s1527 = smul.addr %s1523, 128
          %s1528 = scalar_lea.hbm %s3, %s1527
          %s1529 = sshll.u32 %s1519, 4
          %s1530 = int_to_ptr.vmem [resolvable:$true] %s1529
          %1535 = dma.vmem_to_hbm [thread:$0]  %s1530, 2048, %s1528, %s1516, 128, 128, 8
        $region44: #{tpu_custom_call.1} parent=31 // pred_fallthru
          _
      $region32: #{tpu_custom_call.1} parent=5 // pred_fallthru
        _
      %p1536 = scmp.le.s32.totalorder 2, %s16
      // Predicated region
      $region45: #{tpu_custom_call.1} parent=5 // pred_check
        %p1537 = pneg %p1536
      $region46: #{tpu_custom_call.1} parent=5 // pred_check_branch
        %1539 = sbr.rel (%p1537) target = $region48
      $region47: #{tpu_custom_call.1} parent=5 // pred_region
        %s1540 = ssub.s32 %s16, 2
        // Predicated region
        $region49: #{tpu_custom_call.1} parent=47 // pred_check
          %p1541 = pneg %p113
        $region50: #{tpu_custom_call.1} parent=47 // pred_check_branch
          %1543 = sbr.rel (%p1541) target = $region52
        $region51: #{tpu_custom_call.1} parent=47 // pred_region
          %s1544 = sand.u32 %s98, 1
          %s1545 = scalar_lea.sflag [#allocation4], %s1544
          %s1546 = sand.u32 %s98, 1
          %s1547 = smul.addr %s1546, 128
          %s1548 = scalar_lea.vmem [#allocation7], %s1547
          %1549 = dma.done %s1545, 2048
        $region52: #{tpu_custom_call.1} parent=47 // pred_fallthru
          _
      $region48: #{tpu_custom_call.1} parent=5 // pred_fallthru
        _
    $region6: #{tpu_custom_call.1} parent=1 // loop_footer
      %s20 = sadd.s32 1, %s16
    $region7: #{tpu_custom_call.1} parent=1 // loop_footer_branch
      %15 = sbr.rel target = $region3
    $region8: #{tpu_custom_call.1} parent=1 // loop_exit
      _
    %1550 = vsyncpa [#allocation3], 1
    %s1551 = scalar_lea.sflag [#allocation3], 1
    %1552 = vsyncpa %s1551, 1
    %1553 = vsyncpa [#allocation6], 1
    %1554 = vsyncpa [#allocation4], 1
    %s1555 = scalar_lea.sflag [#allocation4], 1
    %1556 = vsyncpa %s1555, 1

</llo_original>
